<compile_context>
chip_gen: v6e
topology: v6e:2x2x1
jax: 0.10.0
libtpu: 0.0.40
codegen_flags: <defaults>
</compile_context>

<pallas_src>
import functools

import jax
import jax.numpy as jnp
from jax import lax
from jax.experimental import pallas as pl
from jax.experimental.pallas import tpu as pltpu


def _round_up(x, m):
    return ((x + m - 1) // m) * m


# ----------------------------------------------------------------------------
# Pallas kernel: chunked, double-buffered manual DMA row gather + fused LayerNorm.
# ----------------------------------------------------------------------------
def _emb_layernorm_kernel(ids_ref, emb_hbm, gamma_ref, beta_ref, out_ref,
                          rows_vmem, copy_sem, *, eps, tile, chunk, n_chunks):
    base = pl.program_id(0) * tile

    def issue_chunk(c, slot):
        # Issue `chunk` single-row gathers; all stay in flight on copy_sem[slot].
        chunk_base = base + c * chunk

        def body(t, carry):
            row = ids_ref[chunk_base + t]                 # SMEM scalar read
            pltpu.make_async_copy(
                emb_hbm.at[pl.ds(row, 1), :],             # (1, H) HBM row
                rows_vmem.at[slot, pl.ds(t, 1), :],       # (1, H) VMEM slot row
                copy_sem.at[slot],
            ).start()
            return carry

        # Partially unrolled so the LLO scheduler can interleave SMEM loads,
        # address math and descriptor pushes.
        lax.fori_loop(0, chunk, body, 0, unroll=8)

    def wait_chunk(slot):
        # DMA semaphores count bytes: all `chunk` row copies signal
        # copy_sem[slot], so a single wait on a descriptor covering the whole
        # (chunk, H) slot buffer drains them all at once.
        pltpu.make_async_copy(
            emb_hbm.at[pl.ds(0, chunk), :],               # shape-only src (byte count)
            rows_vmem.at[slot],
            copy_sem.at[slot],
        ).wait()

    # gamma/beta cast once per tile (hoisted out of the chunk loop).
    gamma = gamma_ref[...].astype(jnp.float32)            # (1, H)
    beta = beta_ref[...].astype(jnp.float32)

    issue_chunk(0, 0)                                     # prime the pipeline
    for c in range(n_chunks):                             # static trip count
        slot = c & 1
        if c + 1 < n_chunks:
            issue_chunk(c + 1, 1 - slot)                  # prefetch next chunk
        wait_chunk(slot)                                  # one aggregate wait

        # ---- fused LayerNorm on this (chunk, H) slab ------------------------
        x = rows_vmem[slot].astype(jnp.float32)           # (chunk, H)
        mean = jnp.mean(x, axis=-1, keepdims=True)
        centered = x - mean
        var = jnp.mean(centered * centered, axis=-1, keepdims=True)
        inv = lax.rsqrt(var + eps)
        out_ref[pl.ds(c * chunk, chunk), :] = (
            centered * inv * gamma + beta).astype(out_ref.dtype)
    # TODO(synk): training-mode dropout (pltpu.prng_random_bits mask) not
    # implemented; eval-mode dropout is identity, matching module.eval().


def icd_bert_embeddings(input_ids, word_embeddings, gamma, beta,
                        *, layer_norm_eps=1e-12, tokens_per_tile=512,
                        rows_per_chunk=64):
    """Pallas implementation of ICDBertEmbeddings.forward (inference mode).

    input_ids:        (B, S) int32
    word_embeddings:  (V, H) float (row 0 is the padding row, zeros)
    gamma, beta:      (H,)   LayerNorm affine params
    returns:          (B, S, H) in word_embeddings.dtype
    """
    B, S = input_ids.shape
    V, H = word_embeddings.shape
    n_tok = B * S

    # --- tile of tokens per grid step (multiple of 8 -> sublane-dense output) ---
    tile = max(8, min(tokens_per_tile, _round_up(n_tok, 8)))
    tile = (tile // 8) * 8
    # Prefer >= 2 tiles so the ("parallel",) axis gives both v7x TensorCores work.
    if _round_up(n_tok, tile) // tile < 2 and n_tok > 8:
        tile = max(8, _round_up((n_tok + 1) // 2, 8))
    n_tok_pad = _round_up(n_tok, tile)
    n_tiles = n_tok_pad // tile

    # --- chunk size for the double-buffered in-tile gather -----------------------
    chunk = 8
    for cand in (min(rows_per_chunk, 64), 32, 16, 8):
        if 8 <= cand <= tile and tile % cand == 0 and cand <= V:
            chunk = cand
            break
    n_chunks = tile // chunk

    # --- hoist the id clamp out of the kernel ------------------------------------
    ids_flat = input_ids.reshape(n_tok).astype(jnp.int32)
    ids_flat = jnp.clip(ids_flat, 0, V - 1)           # guard bad ids (wrapper-side)
    if n_tok_pad != n_tok:
        # pad with id 0 (the zero padding row); padded outputs are sliced off.
        ids_flat = jnp.pad(ids_flat, (0, n_tok_pad - n_tok))

    gamma2 = gamma.reshape(1, H)
    beta2 = beta.reshape(1, H)

    # Explicit VMEM budget (footprint is tiny vs. the 32 MiB scoped default on all
    # generations, incl. v7x's 64 MiB physical VMEM).
    dsize = jnp.dtype(word_embeddings.dtype).itemsize
    vmem_bytes = (2 * tile * H * dsize       # double-buffered output block
                  + 2 * chunk * H * dsize    # rows_vmem double buffer
                  + 4 * H * 4)               # gamma/beta blocks
    vmem_limit = int(min(32 << 20, max(8 << 20, 2 * vmem_bytes)))

    kernel = functools.partial(_emb_layernorm_kernel, eps=layer_norm_eps,
                               tile=tile, chunk=chunk, n_chunks=n_chunks)

    out_pad = pl.pallas_call(
        kernel,
        out_shape=jax.ShapeDtypeStruct((n_tok_pad, H), word_embeddings.dtype),
        grid_spec=pltpu.PrefetchScalarGridSpec(
            num_scalar_prefetch=1,                  # token ids -> SMEM
            grid=(n_tiles,),
            in_specs=[
                pl.BlockSpec(memory_space=pl.ANY),              # table in HBM
                pl.BlockSpec((1, H), lambda i, ids: (0, 0)),    # gamma
                pl.BlockSpec((1, H), lambda i, ids: (0, 0)),    # beta
            ],
            out_specs=pl.BlockSpec((tile, H), lambda i, ids: (i, 0)),
            scratch_shapes=[
                pltpu.VMEM((2, chunk, H), word_embeddings.dtype),  # gather slots
                pltpu.SemaphoreType.DMA((2,)),                     # per-slot sems
            ],
        ),
        compiler_params=pltpu.CompilerParams(
            # tiles are fully independent -> v7x can use both TensorCores
            dimension_semantics=("parallel",),
            vmem_limit_bytes=vmem_limit),
    )(ids_flat, word_embeddings, gamma2, beta2)

    if n_tok_pad != n_tok:
        out_pad = out_pad[:n_tok]
    return out_pad.reshape(B, S, H)


# ----------------------------------------------------------------------------
# Pure-JAX reference (for correctness check only)
# ----------------------------------------------------------------------------
def _reference(input_ids, word_embeddings, gamma, beta, eps=1e-12):
    x = word_embeddings[input_ids]                                # (B, S, H)
    mean = jnp.mean(x, axis=-1, keepdims=True)
    var = jnp.mean((x - mean) ** 2, axis=-1, keepdims=True)
    return (x - mean) * jax.lax.rsqrt(var + eps) * gamma + beta


if __name__ == "__main__":
    # Small, deterministic synthetic config.
    vocab_size = 64
    hidden_size = 128
    batch, seq = 2, 8
    eps = 1e-12

    key = jax.random.PRNGKey(0)
    k_emb, k_ids = jax.random.split(key)

    # nn.Embedding(vocab, hidden, padding_idx=0): row 0 zeroed at init.
    word_embeddings = 0.02 * jax.random.normal(
        k_emb, (vocab_size, hidden_size), dtype=jnp.float32)
    word_embeddings = word_embeddings.at[0].set(0.0)

    # BertLayerNorm params: weight=1, bias=0 at init.
    gamma = jnp.ones((hidden_size,), dtype=jnp.float32)
    beta = jnp.zeros((hidden_size,), dtype=jnp.float32)

    input_ids = jax.random.randint(
        k_ids, (batch, seq), minval=0, maxval=vocab_size, dtype=jnp.int32)

    out = icd_bert_embeddings(input_ids, word_embeddings, gamma, beta,
                              layer_norm_eps=eps)
    out = jax.block_until_ready(out)

    ref = _reference(input_ids, word_embeddings, gamma, beta, eps)
    assert out.shape == (batch, seq, hidden_size)
    assert jnp.allclose(out, ref, atol=1e-5, rtol=1e-5)

    print("KERNEL_OK")
</pallas_src>

<mosaic_0001>
module attributes {stable_mosaic.version = 11 : i64} {
  func.func @_emb_layernorm_kernel(%arg0: i32, %arg1: memref<16xi32, #tpu.memory_space<smem>>, %arg2: memref<64x128xf32, #tpu.memory_space<any>>, %arg3: memref<1x128xf32, #tpu.memory_space<vmem>>, %arg4: memref<1x128xf32, #tpu.memory_space<vmem>>, %arg5: memref<8x128xf32, #tpu.memory_space<vmem>>, %arg6: memref<2x8x128xf32, #tpu.memory_space<vmem>>, %arg7: memref<2x!tpu.dma_semaphore, #tpu.memory_space<semaphore_mem>>) attributes {dimension_semantics = [#tpu.dimension_semantics<parallel>], iteration_bounds = array<i64: 2>, scalar_prefetch = 1 : i64, scratch_operands = 2 : i64, tpu.core_type = #tpu.core_type<tc>, window_params = [{}, {pipeline_mode = #tpu.pipeline_mode<synchronous>, transform_indices = @transform_1, window_bounds = array<i64: 1, 128>}, {pipeline_mode = #tpu.pipeline_mode<synchronous>, transform_indices = @transform_2, window_bounds = array<i64: 1, 128>}, {transform_indices = @transform_3, window_bounds = array<i64: 8, 128>}]} {
    %c8_i32 = arith.constant 8 : i32
    %0 = arith.muli %arg0, %c8_i32 : i32
    %c0 = arith.constant 0 : index
    %c0_0 = arith.constant 0 : index
    %1 = vector.load %arg3[%c0, %c0_0] : memref<1x128xf32, #tpu.memory_space<vmem>>, vector<1x128xf32>
    %c0_1 = arith.constant 0 : index
    %c0_2 = arith.constant 0 : index
    %2 = vector.load %arg4[%c0_1, %c0_2] : memref<1x128xf32, #tpu.memory_space<vmem>>, vector<1x128xf32>
    %c0_i32 = arith.constant 0 : i32
    %3 = arith.addi %0, %c0_i32 : i32
    %c0_i32_3 = arith.constant 0 : i32
    %4 = arith.addi %3, %c0_i32_3 : i32
    %5 = arith.index_cast %4 : i32 to index
    %6 = memref.load %arg1[%5] : memref<16xi32, #tpu.memory_space<smem>>
    %c0_i32_4 = arith.constant 0 : i32
    %c0_i32_5 = arith.constant 0 : i32
    %c0_i32_6 = arith.constant 0 : i32
    %7 = tpu.memref_slice %arg2[%6, %c0_i32_6] : memref<64x128xf32, #tpu.memory_space<any>> -> memref<1x128xf32, #tpu.memory_space<any>>
    %c0_i32_7 = arith.constant 0 : i32
    %8 = tpu.memref_slice %arg6[%c0_i32_4, %c0_i32_3, %c0_i32_7] : memref<2x8x128xf32, #tpu.memory_space<vmem>> -> memref<1x1x128xf32, #tpu.memory_space<vmem>>
    %9 = tpu.memref_squeeze %8 : memref<1x1x128xf32, #tpu.memory_space<vmem>> -> memref<1x128xf32, #tpu.memory_space<vmem>>
    %10 = tpu.memref_slice %arg7[%c0_i32_5] : memref<2x!tpu.dma_semaphore, #tpu.memory_space<semaphore_mem>> -> memref<1x!tpu.dma_semaphore, #tpu.memory_space<semaphore_mem>>
    %11 = tpu.memref_squeeze %10 : memref<1x!tpu.dma_semaphore, #tpu.memory_space<semaphore_mem>> -> memref<!tpu.dma_semaphore, #tpu.memory_space<semaphore_mem>>
    tpu.enqueue_dma source(%7 : memref<1x128xf32, #tpu.memory_space<any>>) target(%9 : memref<1x128xf32, #tpu.memory_space<vmem>>) target_semaphore(%11 : memref<!tpu.dma_semaphore, #tpu.memory_space<semaphore_mem>>)
    %c1_i32 = arith.constant 1 : i32
    %12 = arith.addi %3, %c1_i32 : i32
    %13 = arith.index_cast %12 : i32 to index
    %14 = memref.load %arg1[%13] : memref<16xi32, #tpu.memory_space<smem>>
    %c0_i32_8 = arith.constant 0 : i32
    %c0_i32_9 = arith.constant 0 : i32
    %c0_i32_10 = arith.constant 0 : i32
    %15 = tpu.memref_slice %arg2[%14, %c0_i32_10] : memref<64x128xf32, #tpu.memory_space<any>> -> memref<1x128xf32, #tpu.memory_space<any>>
    %c0_i32_11 = arith.constant 0 : i32
    %16 = tpu.memref_slice %arg6[%c0_i32_8, %c1_i32, %c0_i32_11] : memref<2x8x128xf32, #tpu.memory_space<vmem>> -> memref<1x1x128xf32, #tpu.memory_space<vmem>>
    %17 = tpu.memref_squeeze %16 : memref<1x1x128xf32, #tpu.memory_space<vmem>> -> memref<1x128xf32, #tpu.memory_space<vmem>>
    %18 = tpu.memref_slice %arg7[%c0_i32_9] : memref<2x!tpu.dma_semaphore, #tpu.memory_space<semaphore_mem>> -> memref<1x!tpu.dma_semaphore, #tpu.memory_space<semaphore_mem>>
    %19 = tpu.memref_squeeze %18 : memref<1x!tpu.dma_semaphore, #tpu.memory_space<semaphore_mem>> -> memref<!tpu.dma_semaphore, #tpu.memory_space<semaphore_mem>>
    tpu.enqueue_dma source(%15 : memref<1x128xf32, #tpu.memory_space<any>>) target(%17 : memref<1x128xf32, #tpu.memory_space<vmem>>) target_semaphore(%19 : memref<!tpu.dma_semaphore, #tpu.memory_space<semaphore_mem>>)
    %c2_i32 = arith.constant 2 : i32
    %20 = arith.addi %3, %c2_i32 : i32
    %21 = arith.index_cast %20 : i32 to index
    %22 = memref.load %arg1[%21] : memref<16xi32, #tpu.memory_space<smem>>
    %c0_i32_12 = arith.constant 0 : i32
    %c0_i32_13 = arith.constant 0 : i32
    %c0_i32_14 = arith.constant 0 : i32
    %23 = tpu.memref_slice %arg2[%22, %c0_i32_14] : memref<64x128xf32, #tpu.memory_space<any>> -> memref<1x128xf32, #tpu.memory_space<any>>
    %c0_i32_15 = arith.constant 0 : i32
    %24 = tpu.memref_slice %arg6[%c0_i32_12, %c2_i32, %c0_i32_15] : memref<2x8x128xf32, #tpu.memory_space<vmem>> -> memref<1x1x128xf32, #tpu.memory_space<vmem>>
    %25 = tpu.memref_squeeze %24 : memref<1x1x128xf32, #tpu.memory_space<vmem>> -> memref<1x128xf32, #tpu.memory_space<vmem>>
    %26 = tpu.memref_slice %arg7[%c0_i32_13] : memref<2x!tpu.dma_semaphore, #tpu.memory_space<semaphore_mem>> -> memref<1x!tpu.dma_semaphore, #tpu.memory_space<semaphore_mem>>
    %27 = tpu.memref_squeeze %26 : memref<1x!tpu.dma_semaphore, #tpu.memory_space<semaphore_mem>> -> memref<!tpu.dma_semaphore, #tpu.memory_space<semaphore_mem>>
    tpu.enqueue_dma source(%23 : memref<1x128xf32, #tpu.memory_space<any>>) target(%25 : memref<1x128xf32, #tpu.memory_space<vmem>>) target_semaphore(%27 : memref<!tpu.dma_semaphore, #tpu.memory_space<semaphore_mem>>)
    %c3_i32 = arith.constant 3 : i32
    %28 = arith.addi %3, %c3_i32 : i32
    %29 = arith.index_cast %28 : i32 to index
    %30 = memref.load %arg1[%29] : memref<16xi32, #tpu.memory_space<smem>>
    %c0_i32_16 = arith.constant 0 : i32
    %c0_i32_17 = arith.constant 0 : i32
    %c0_i32_18 = arith.constant 0 : i32
    %31 = tpu.memref_slice %arg2[%30, %c0_i32_18] : memref<64x128xf32, #tpu.memory_space<any>> -> memref<1x128xf32, #tpu.memory_space<any>>
    %c0_i32_19 = arith.constant 0 : i32
    %32 = tpu.memref_slice %arg6[%c0_i32_16, %c3_i32, %c0_i32_19] : memref<2x8x128xf32, #tpu.memory_space<vmem>> -> memref<1x1x128xf32, #tpu.memory_space<vmem>>
    %33 = tpu.memref_squeeze %32 : memref<1x1x128xf32, #tpu.memory_space<vmem>> -> memref<1x128xf32, #tpu.memory_space<vmem>>
    %34 = tpu.memref_slice %arg7[%c0_i32_17] : memref<2x!tpu.dma_semaphore, #tpu.memory_space<semaphore_mem>> -> memref<1x!tpu.dma_semaphore, #tpu.memory_space<semaphore_mem>>
    %35 = tpu.memref_squeeze %34 : memref<1x!tpu.dma_semaphore, #tpu.memory_space<semaphore_mem>> -> memref<!tpu.dma_semaphore, #tpu.memory_space<semaphore_mem>>
    tpu.enqueue_dma source(%31 : memref<1x128xf32, #tpu.memory_space<any>>) target(%33 : memref<1x128xf32, #tpu.memory_space<vmem>>) target_semaphore(%35 : memref<!tpu.dma_semaphore, #tpu.memory_space<semaphore_mem>>)
    %c4_i32 = arith.constant 4 : i32
    %36 = arith.addi %3, %c4_i32 : i32
    %37 = arith.index_cast %36 : i32 to index
    %38 = memref.load %arg1[%37] : memref<16xi32, #tpu.memory_space<smem>>
    %c0_i32_20 = arith.constant 0 : i32
    %c0_i32_21 = arith.constant 0 : i32
    %c0_i32_22 = arith.constant 0 : i32
    %39 = tpu.memref_slice %arg2[%38, %c0_i32_22] : memref<64x128xf32, #tpu.memory_space<any>> -> memref<1x128xf32, #tpu.memory_space<any>>
    %c0_i32_23 = arith.constant 0 : i32
    %40 = tpu.memref_slice %arg6[%c0_i32_20, %c4_i32, %c0_i32_23] : memref<2x8x128xf32, #tpu.memory_space<vmem>> -> memref<1x1x128xf32, #tpu.memory_space<vmem>>
    %41 = tpu.memref_squeeze %40 : memref<1x1x128xf32, #tpu.memory_space<vmem>> -> memref<1x128xf32, #tpu.memory_space<vmem>>
    %42 = tpu.memref_slice %arg7[%c0_i32_21] : memref<2x!tpu.dma_semaphore, #tpu.memory_space<semaphore_mem>> -> memref<1x!tpu.dma_semaphore, #tpu.memory_space<semaphore_mem>>
    %43 = tpu.memref_squeeze %42 : memref<1x!tpu.dma_semaphore, #tpu.memory_space<semaphore_mem>> -> memref<!tpu.dma_semaphore, #tpu.memory_space<semaphore_mem>>
    tpu.enqueue_dma source(%39 : memref<1x128xf32, #tpu.memory_space<any>>) target(%41 : memref<1x128xf32, #tpu.memory_space<vmem>>) target_semaphore(%43 : memref<!tpu.dma_semaphore, #tpu.memory_space<semaphore_mem>>)
    %c5_i32 = arith.constant 5 : i32
    %44 = arith.addi %3, %c5_i32 : i32
    %45 = arith.index_cast %44 : i32 to index
    %46 = memref.load %arg1[%45] : memref<16xi32, #tpu.memory_space<smem>>
    %c0_i32_24 = arith.constant 0 : i32
    %c0_i32_25 = arith.constant 0 : i32
    %c0_i32_26 = arith.constant 0 : i32
    %47 = tpu.memref_slice %arg2[%46, %c0_i32_26] : memref<64x128xf32, #tpu.memory_space<any>> -> memref<1x128xf32, #tpu.memory_space<any>>
    %c0_i32_27 = arith.constant 0 : i32
    %48 = tpu.memref_slice %arg6[%c0_i32_24, %c5_i32, %c0_i32_27] : memref<2x8x128xf32, #tpu.memory_space<vmem>> -> memref<1x1x128xf32, #tpu.memory_space<vmem>>
    %49 = tpu.memref_squeeze %48 : memref<1x1x128xf32, #tpu.memory_space<vmem>> -> memref<1x128xf32, #tpu.memory_space<vmem>>
    %50 = tpu.memref_slice %arg7[%c0_i32_25] : memref<2x!tpu.dma_semaphore, #tpu.memory_space<semaphore_mem>> -> memref<1x!tpu.dma_semaphore, #tpu.memory_space<semaphore_mem>>
    %51 = tpu.memref_squeeze %50 : memref<1x!tpu.dma_semaphore, #tpu.memory_space<semaphore_mem>> -> memref<!tpu.dma_semaphore, #tpu.memory_space<semaphore_mem>>
    tpu.enqueue_dma source(%47 : memref<1x128xf32, #tpu.memory_space<any>>) target(%49 : memref<1x128xf32, #tpu.memory_space<vmem>>) target_semaphore(%51 : memref<!tpu.dma_semaphore, #tpu.memory_space<semaphore_mem>>)
    %c6_i32 = arith.constant 6 : i32
    %52 = arith.addi %3, %c6_i32 : i32
    %53 = arith.index_cast %52 : i32 to index
    %54 = memref.load %arg1[%53] : memref<16xi32, #tpu.memory_space<smem>>
    %c0_i32_28 = arith.constant 0 : i32
    %c0_i32_29 = arith.constant 0 : i32
    %c0_i32_30 = arith.constant 0 : i32
    %55 = tpu.memref_slice %arg2[%54, %c0_i32_30] : memref<64x128xf32, #tpu.memory_space<any>> -> memref<1x128xf32, #tpu.memory_space<any>>
    %c0_i32_31 = arith.constant 0 : i32
    %56 = tpu.memref_slice %arg6[%c0_i32_28, %c6_i32, %c0_i32_31] : memref<2x8x128xf32, #tpu.memory_space<vmem>> -> memref<1x1x128xf32, #tpu.memory_space<vmem>>
    %57 = tpu.memref_squeeze %56 : memref<1x1x128xf32, #tpu.memory_space<vmem>> -> memref<1x128xf32, #tpu.memory_space<vmem>>
    %58 = tpu.memref_slice %arg7[%c0_i32_29] : memref<2x!tpu.dma_semaphore, #tpu.memory_space<semaphore_mem>> -> memref<1x!tpu.dma_semaphore, #tpu.memory_space<semaphore_mem>>
    %59 = tpu.memref_squeeze %58 : memref<1x!tpu.dma_semaphore, #tpu.memory_space<semaphore_mem>> -> memref<!tpu.dma_semaphore, #tpu.memory_space<semaphore_mem>>
    tpu.enqueue_dma source(%55 : memref<1x128xf32, #tpu.memory_space<any>>) target(%57 : memref<1x128xf32, #tpu.memory_space<vmem>>) target_semaphore(%59 : memref<!tpu.dma_semaphore, #tpu.memory_space<semaphore_mem>>)
    %c7_i32 = arith.constant 7 : i32
    %60 = arith.addi %3, %c7_i32 : i32
    %61 = arith.index_cast %60 : i32 to index
    %62 = memref.load %arg1[%61] : memref<16xi32, #tpu.memory_space<smem>>
    %c0_i32_32 = arith.constant 0 : i32
    %c0_i32_33 = arith.constant 0 : i32
    %c0_i32_34 = arith.constant 0 : i32
    %63 = tpu.memref_slice %arg2[%62, %c0_i32_34] : memref<64x128xf32, #tpu.memory_space<any>> -> memref<1x128xf32, #tpu.memory_space<any>>
    %c0_i32_35 = arith.constant 0 : i32
    %64 = tpu.memref_slice %arg6[%c0_i32_32, %c7_i32, %c0_i32_35] : memref<2x8x128xf32, #tpu.memory_space<vmem>> -> memref<1x1x128xf32, #tpu.memory_space<vmem>>
    %65 = tpu.memref_squeeze %64 : memref<1x1x128xf32, #tpu.memory_space<vmem>> -> memref<1x128xf32, #tpu.memory_space<vmem>>
    %66 = tpu.memref_slice %arg7[%c0_i32_33] : memref<2x!tpu.dma_semaphore, #tpu.memory_space<semaphore_mem>> -> memref<1x!tpu.dma_semaphore, #tpu.memory_space<semaphore_mem>>
    %67 = tpu.memref_squeeze %66 : memref<1x!tpu.dma_semaphore, #tpu.memory_space<semaphore_mem>> -> memref<!tpu.dma_semaphore, #tpu.memory_space<semaphore_mem>>
    tpu.enqueue_dma source(%63 : memref<1x128xf32, #tpu.memory_space<any>>) target(%65 : memref<1x128xf32, #tpu.memory_space<vmem>>) target_semaphore(%67 : memref<!tpu.dma_semaphore, #tpu.memory_space<semaphore_mem>>)
    %c8_i32_36 = arith.constant 8 : i32
    %c0_i32_37 = arith.constant 0 : i32
    %c0_i32_38 = arith.constant 0 : i32
    %c0_i32_39 = arith.constant 0 : i32
    %c0_i32_40 = arith.constant 0 : i32
    %68 = tpu.memref_slice %arg2[%c0_i32_39, %c0_i32_40] : memref<64x128xf32, #tpu.memory_space<any>> -> memref<8x128xf32, #tpu.memory_space<any>>
    %c0_i32_41 = arith.constant 0 : i32
    %c0_i32_42 = arith.constant 0 : i32
    %69 = tpu.memref_slice %arg6[%c0_i32_37, %c0_i32_41, %c0_i32_42] : memref<2x8x128xf32, #tpu.memory_space<vmem>> -> memref<1x8x128xf32, #tpu.memory_space<vmem>>
    %70 = tpu.memref_squeeze %69 : memref<1x8x128xf32, #tpu.memory_space<vmem>> -> memref<8x128xf32, #tpu.memory_space<vmem>>
    %71 = tpu.memref_slice %arg7[%c0_i32_38] : memref<2x!tpu.dma_semaphore, #tpu.memory_space<semaphore_mem>> -> memref<1x!tpu.dma_semaphore, #tpu.memory_space<semaphore_mem>>
    %72 = tpu.memref_squeeze %71 : memref<1x!tpu.dma_semaphore, #tpu.memory_space<semaphore_mem>> -> memref<!tpu.dma_semaphore, #tpu.memory_space<semaphore_mem>>
    tpu.wait_dma2 semaphore(%72 : memref<!tpu.dma_semaphore, #tpu.memory_space<semaphore_mem>>) src(%68 : memref<8x128xf32, #tpu.memory_space<any>>) dst(%70 : memref<8x128xf32, #tpu.memory_space<vmem>>)
    %c0_43 = arith.constant 0 : index
    %c0_44 = arith.constant 0 : index
    %c0_45 = arith.constant 0 : index
    %73 = vector.load %arg6[%c0_43, %c0_44, %c0_45] : memref<2x8x128xf32, #tpu.memory_space<vmem>>, vector<1x8x128xf32>
    %74 = vector.shape_cast %73 : vector<1x8x128xf32> to vector<8x128xf32>
    %cst = arith.constant dense<0.000000e+00> : vector<8xf32>
    %75 = vector.multi_reduction <add>, %74, %cst [1] : vector<8x128xf32> to vector<8xf32>
    %76 = vector.shape_cast %75 : vector<8xf32> to vector<8x1xf32>
    %cst_46 = arith.constant 1.280000e+02 : f32
    %77 = vector.broadcast %cst_46 : f32 to vector<8x1xf32>
    %78 = arith.divf %76, %77 : vector<8x1xf32>
    %79 = vector.broadcast %78 : vector<8x1xf32> to vector<8x128xf32>
    %80 = arith.subf %74, %79 : vector<8x128xf32>
    %81 = arith.mulf %80, %80 : vector<8x128xf32>
    %cst_47 = arith.constant dense<0.000000e+00> : vector<8xf32>
    %82 = vector.multi_reduction <add>, %81, %cst_47 [1] : vector<8x128xf32> to vector<8xf32>
    %83 = vector.shape_cast %82 : vector<8xf32> to vector<8x1xf32>
    %cst_48 = arith.constant 1.280000e+02 : f32
    %84 = vector.broadcast %cst_48 : f32 to vector<8x1xf32>
    %85 = arith.divf %83, %84 : vector<8x1xf32>
    %cst_49 = arith.constant 9.99999996E-13 : f32
    %86 = vector.broadcast %cst_49 : f32 to vector<8x1xf32>
    %87 = arith.addf %85, %86 : vector<8x1xf32>
    %88 = math.rsqrt %87 : vector<8x1xf32>
    %89 = vector.broadcast %88 : vector<8x1xf32> to vector<8x128xf32>
    %90 = arith.mulf %80, %89 : vector<8x128xf32>
    %91 = vector.broadcast %1 : vector<1x128xf32> to vector<8x128xf32>
    %92 = arith.mulf %90, %91 : vector<8x128xf32>
    %93 = vector.broadcast %2 : vector<1x128xf32> to vector<8x128xf32>
    %94 = arith.addf %92, %93 : vector<8x128xf32>
    %c0_50 = arith.constant 0 : index
    %c0_51 = arith.constant 0 : index
    %95 = vector.load %arg5[%c0_50, %c0_51] : memref<8x128xf32, #tpu.memory_space<vmem>>, vector<8x128xf32>
    tpu.vector_store %arg5[%c0_50, %c0_51], %94 {strides = array<i32>} : memref<8x128xf32, #tpu.memory_space<vmem>>, vector<8x128xf32>,
    return
  }
  func.func @transform_1(%arg0: i32, %arg1: memref<16xi32, #tpu.memory_space<smem>>) -> (i32, i32) {
    %c0_i32 = arith.constant 0 : i32
    %c0_i32_0 = arith.constant 0 : i32
    %c0_i32_1 = arith.constant 0 : i32
    return %c0_i32, %c0_i32_0 : i32, i32
  }
  func.func @transform_2(%arg0: i32, %arg1: memref<16xi32, #tpu.memory_space<smem>>) -> (i32, i32) {
    %c0_i32 = arith.constant 0 : i32
    %c0_i32_0 = arith.constant 0 : i32
    %c0_i32_1 = arith.constant 0 : i32
    return %c0_i32, %c0_i32_0 : i32, i32
  }
  func.func @transform_3(%arg0: i32, %arg1: memref<16xi32, #tpu.memory_space<smem>>) -> (i32, i32) {
    %c0_i32 = arith.constant 0 : i32
    %c0_i32_0 = arith.constant 0 : i32
    return %arg0, %c0_i32 : i32, i32
  }
}

</mosaic_0001>

<llo_original>
// kernel: tpu_custom_call.1
$region0: #{tpu_custom_call.1}
  #allocation0 [shape = 'u32[]', space=smem, size = 0x4, offset = 0x4, fixed_abs, tag = 'smem constant byte address 0x4 - core index']
  #allocation1 [shape = 'u32[144,128]{1,0:T(1,128)}', space=vmem, size = 0x12000, scoped, tag = 'internal scratch']
  #allocation2 [shape = 'f32[2,8,128]{2,1,0:T(8,128)}', space=vmem, size = 0x2000, scoped, tag = 'scratch operand']
  #allocation3 [shape = 's32[2]{0}', space=sflag, size = 0x8, scoped, tag = 'scratch operand']
  #allocation4 [shape = 's32[1]{0}', space=sflag, size = 0x4, scoped, tag = 'scoped memory for tpu_custom_call.1']
  #allocation5 [shape = 'u8[512]{0}', space=smem, size = 0x200, scoped, tag = 'prefetched SMEM operand 0']
  #allocation8 [shape = 's32[]', space=sflag, size = 0x4, offset = 0, fixed_abs, tag = 'sflag constant byte address 0x0 - dummy sync flag']
  #allocation9 [shape = 's32[]', space=sflag, size = 0x4, offset = 0, fixed_abs, tag = 'sflag constant byte address 0x0 - dummy sync flag']
  #allocation10 [shape = 'u32[]', space=smem, size = 0x4, offset = 0x44, fixed_abs, tag = 'smem constant byte address 0x44 - assertion arg 0']
  #allocation11 [shape = 'u32[]', space=smem, size = 0x4, offset = 0x48, fixed_abs, tag = 'smem constant byte address 0x48 - assertion arg 1']
  #allocation12 [shape = 's32[]', space=sflag, size = 0x4, offset = 0, fixed_abs, tag = 'sflag constant byte address 0x0 - dummy sync flag']
  #allocation13 [shape = 's32[]', space=sflag, size = 0x4, offset = 0, fixed_abs, tag = 'sflag constant byte address 0x0 - dummy sync flag']
  #allocation14 [shape = 's32[]', space=sflag, size = 0x4, offset = 0, fixed_abs, tag = 'sflag constant byte address 0x0 - dummy sync flag']
  #allocation15 [shape = 's32[]', space=sflag, size = 0x4, offset = 0, fixed_abs, tag = 'sflag constant byte address 0x0 - dummy sync flag']
  #allocation16 [shape = 's32[]', space=sflag, size = 0x4, offset = 0, fixed_abs, tag = 'sflag constant byte address 0x0 - dummy sync flag']
  #allocation17 [shape = 's32[]', space=sflag, size = 0x4, offset = 0, fixed_abs, tag = 'sflag constant byte address 0x0 - dummy sync flag']
  #allocation18 [shape = 's32[]', space=sflag, size = 0x4, offset = 0, fixed_abs, tag = 'sflag constant byte address 0x0 - dummy sync flag']
  #allocation19 [shape = 's32[]', space=sflag, size = 0x4, offset = 0, fixed_abs, tag = 'sflag constant byte address 0x0 - dummy sync flag']
  #allocation20 [shape = 's32[]', space=sflag, size = 0x4, offset = 0, fixed_abs, tag = 'sflag constant byte address 0x0 - dummy sync flag']
  #allocation21 [shape = 's32[]', space=sflag, size = 0x4, offset = 0, fixed_abs, tag = 'sflag constant byte address 0x0 - dummy sync flag']
  #allocation22 [shape = 's32[]', space=sflag, size = 0x4, offset = 0, fixed_abs, tag = 'sflag constant byte address 0x0 - dummy sync flag']
  #allocation23 [shape = 's32[]', space=sflag, size = 0x4, offset = 0, fixed_abs, tag = 'sflag constant byte address 0x0 - dummy sync flag']
  #allocation24 [shape = 's32[]', space=sflag, size = 0x4, offset = 0, fixed_abs, tag = 'sflag constant byte address 0x0 - dummy sync flag']
  #allocation25 [shape = 's32[]', space=sflag, size = 0x4, offset = 0, fixed_abs, tag = 'sflag constant byte address 0x0 - dummy sync flag']
  %s0 = inlined_call_operand.hbm [shape: s32[16], index: 0, kind: input, shape index: {}]
  %s1 = inlined_call_operand.hbm [shape: f32[64,128], index: 1, kind: input, shape index: {}]
  %s2 = inlined_call_operand.vmem [shape: f32[1,128], index: 2, kind: input, shape index: {}]
  %s3 = inlined_call_operand.vmem [shape: f32[1,128], index: 3, kind: input, shape index: {}]
  %s4 = inlined_call_operand.hbm [shape: f32[16,128], index: 4, kind: output, shape index: {}]
  %s5 = sld [smem:[#allocation0]]
  $region73: #{tpu_custom_call.1} parent=0
    _
  %s7 = ssub.s32 1, %s5
  %s8 = scalar_select 0, %s7, %s5
  %10 = dma.hbm_to_smem %s0, 16, [#allocation5], [#allocation4]
  %11 = dma.done [#allocation4], 16
  %12 = sfence
  $region1: #{tpu_custom_call.1} parent=0
    #allocation6 [shape = 'u8[8192]{0}', space=vmem, size = 0x2000, scoped, tag = 'output window, operand 0']
    #allocation7 [shape = 's32[2]{0}', space=sflag, size = 0x8, scoped, tag = 'scoped memory for tpu_custom_call.1']
    %13 = vsyncpa [#allocation7], 0
    %s14 = scalar_lea.sflag [#allocation7], 1
    %15 = vsyncpa %s14, 0
    loop: start=0, step=1, limit=4
    $region2: #{tpu_custom_call.1} parent=1 // loop_pre_header
      _
    $region3: #{tpu_custom_call.1} parent=1 // loop_header
      %s17 = sphi 0, %s21
      %p18 = scmp.ge.s32.totalorder %s17, 4
      %s25 = sphi 0, %s25
      %s27 = sphi 0, %s25
      %s28 = sphi 0, %s27
      %s42 = sphi 0, %s28
      %s46 = sphi 0, %s46
      %s48 = sphi 0, %s46
      %s49 = sphi 0, %s48
      %s63 = sphi 0, %s49
      %s69 = sphi 0, %s71
      %s72 = sphi 0, %s69
      %s73 = sphi 0, %s72
      %s89 = sphi 0, %s73
    $region4: #{tpu_custom_call.1} parent=1 // loop_header_branch
      %20 = sbr.rel (%p18) target = $region8
    $region5: #{tpu_custom_call.1} parent=1 // loop_body
      %s22 = ssub.s32 %s17, 1
      %s23 = ssub.s32 %s17, 2
      %s24 = sadd.s32 %s17, 1
      %s26 = sadd.s32 %s25, 1
      %p29 = scmp.eq.s32.totalorder %s17, 1
      %p30 = scmp.ne.s32.totalorder %s25, %s27
      %p31 = scmp.eq.s32.totalorder %s17, 0
      %p32 = por %p30, %p31
      %p33 = scmp.ne.s32.totalorder %s25, %s27
      %p34 = scmp.eq.s32.totalorder %s22, 1
      %p35 = por %p33, %p34
      %p36 = scmp.ne.s32.totalorder %s27, %s28
      %p37 = scmp.eq.s32.totalorder %s22, 0
      %p38 = por %p36, %p37
      %p39 = scmp.ne.s32.totalorder %s27, %s28
      %p40 = scmp.eq.s32.totalorder %s23, 1
      %p41 = por %p39, %p40
      %p43 = scmp.ne.s32.totalorder %s28, %s42
      %p44 = scmp.eq.s32.totalorder %s23, 0
      %p45 = por %p43, %p44
      %s47 = sadd.s32 %s46, 1
      %p50 = scmp.eq.s32.totalorder %s17, 1
      %p51 = scmp.ne.s32.totalorder %s46, %s48
      %p52 = scmp.eq.s32.totalorder %s17, 0
      %p53 = por %p51, %p52
      %p54 = scmp.ne.s32.totalorder %s46, %s48
      %p55 = scmp.eq.s32.totalorder %s22, 1
      %p56 = por %p54, %p55
      %p57 = scmp.ne.s32.totalorder %s48, %s49
      %p58 = scmp.eq.s32.totalorder %s22, 0
      %p59 = por %p57, %p58
      %p60 = scmp.ne.s32.totalorder %s48, %s49
      %p61 = scmp.eq.s32.totalorder %s23, 1
      %p62 = por %p60, %p61
      %p64 = scmp.ne.s32.totalorder %s49, %s63
      %p65 = scmp.eq.s32.totalorder %s23, 0
      %p66 = por %p64, %p65
      %s67 = ssub.s32 %s17, %s24
      %p68 = scmp.eq.s32.totalorder %s67, 0
      %s70 = sadd.s32 %s69, 1
      %s71 = scalar_select %p68, %s69, %s70
      %p74 = pneg %p68
      %p75 = scmp.eq.s32.totalorder %s17, 1
      %p76 = por %p74, %p75
      %p77 = scmp.ne.s32.totalorder %s69, %s72
      %p78 = scmp.eq.s32.totalorder %s17, 0
      %p79 = por %p77, %p78
      %p80 = scmp.ne.s32.totalorder %s69, %s72
      %p81 = scmp.eq.s32.totalorder %s22, 1
      %p82 = por %p80, %p81
      %p83 = scmp.ne.s32.totalorder %s72, %s73
      %p84 = scmp.eq.s32.totalorder %s22, 0
      %p85 = por %p83, %p84
      %p86 = scmp.ne.s32.totalorder %s72, %s73
      %p87 = scmp.eq.s32.totalorder %s23, 1
      %p88 = por %p86, %p87
      %p90 = scmp.ne.s32.totalorder %s73, %s89
      %p91 = scmp.eq.s32.totalorder %s23, 0
      %p92 = por %p90, %p91
      %p93 = scmp.le.s32.totalorder 1, %s17
      %p94 = scmp.lt.s32.totalorder %s17, 3
      %p95 = pnand %p93, %p94
      %p96 = pneg %p95
      // Predicated region
      $region9: #{tpu_custom_call.1} parent=5 // pred_check
        _
      $region10: #{tpu_custom_call.1} parent=5 // pred_check_branch
        %98 = sbr.rel (%p95) target = $region12
      $region11: #{tpu_custom_call.1} parent=5 // pred_region
        %s99 = ssub.s32 %s17, 1
        // Predicated region
        $region13: #{tpu_custom_call.1} parent=11 // pred_check
          %p100 = pneg %p38
        $region14: #{tpu_custom_call.1} parent=11 // pred_check_branch
          %102 = sbr.rel (%p100) target = $region16
        $region15: #{tpu_custom_call.1} parent=11 // pred_region
          _
        $region16: #{tpu_custom_call.1} parent=11 // pred_fallthru
          _
        // Predicated region
        $region17: #{tpu_custom_call.1} parent=11 // pred_check
          %p103 = pneg %p59
        $region18: #{tpu_custom_call.1} parent=11 // pred_check_branch
          %105 = sbr.rel (%p103) target = $region20
        $region19: #{tpu_custom_call.1} parent=11 // pred_region
          _
        $region20: #{tpu_custom_call.1} parent=11 // pred_fallthru
          _
      $region12: #{tpu_custom_call.1} parent=5 // pred_fallthru
        _
      %p106 = scmp.lt.s32.totalorder %s17, 2
      // Predicated region
      $region21: #{tpu_custom_call.1} parent=5 // pred_check
        %p107 = pneg %p106
      $region22: #{tpu_custom_call.1} parent=5 // pred_check_branch
        %109 = sbr.rel (%p107) target = $region24
      $region23: #{tpu_custom_call.1} parent=5 // pred_region
        _
      $region24: #{tpu_custom_call.1} parent=5 // pred_fallthru
        _
      %p110 = scmp.le.s32.totalorder 1, %s17
      %p111 = scmp.lt.s32.totalorder %s17, 3
      %p112 = pnand %p110, %p111
      %p113 = pneg %p112
      // Predicated region
      $region25: #{tpu_custom_call.1} parent=5 // pred_check
        _
      $region26: #{tpu_custom_call.1} parent=5 // pred_check_branch
        %115 = sbr.rel (%p112) target = $region28
      $region27: #{tpu_custom_call.1} parent=5 // pred_region
        %s116 = ssub.s32 %s17, 1
        %p117 = pneg %p38
        %p118 = pneg %p35
        %p119 = pneg %p59
        %p120 = pneg %p56
        %p121 = pneg %p85
        %p122 = pneg %p82
        %s123 = sand.u32 %s72, 1
        %s124 = scalar_lea.sflag [#allocation7], %s123
        %s125 = sand.u32 %s72, 1
        %s126 = smul.addr %s125, 8
        %s127 = scalar_lea.vmem [#allocation6], %s126
        %s128 = smul.u32 %s22, 8
        %v129 = vld [vmem:[%s2] sm:$0x1]
        %v130 = vld [vmem:[%s3] sm:$0x1]
        %s131 = sld [smem:[#allocation5 + %s128]]
        %s132 = smul.addr %s131, 16
        %s133 = scalar_lea.hbm %s1, %s132
        // Predicated region
        $region29: #{tpu_custom_call.1} parent=27 // pred_check
          _
        $region30: #{tpu_custom_call.1} parent=27 // pred_check_branch
          %135 = sbr.rel target = $region32
        $region31: #{tpu_custom_call.1} parent=27 // pred_region
          %136 = sst [smem:[#allocation10]] [#allocation9]
          %137 = sst [smem:[#allocation11]] [#allocation8]
        $region32: #{tpu_custom_call.1} parent=27 // pred_fallthru
          _
        %139 = shalt.err (0)
        %s141 = sshll.u32 [#allocation2], 4
        %s142 = int_to_ptr.vmem [resolvable:$true] %s141
        %144 = dma.hbm_to_vmem [thread:$0]  %s133, 16, %s142, [#allocation3]
        %s145 = sadd.s32 %s128, 1
        %s146 = sld [smem:[#allocation5 + %s145]]
        %s147 = smul.addr %s146, 16
        %s148 = scalar_lea.hbm %s1, %s147
        %s149 = scalar_lea.vmem [#allocation2], 1
        // Predicated region
        $region33: #{tpu_custom_call.1} parent=27 // pred_check
          _
        $region34: #{tpu_custom_call.1} parent=27 // pred_check_branch
          %151 = sbr.rel target = $region36
        $region35: #{tpu_custom_call.1} parent=27 // pred_region
          %152 = sst [smem:[#allocation10]] [#allocation13]
          %153 = sst [smem:[#allocation11]] [#allocation12]
        $region36: #{tpu_custom_call.1} parent=27 // pred_fallthru
          _
        %155 = shalt.err (0)
        %s157 = sshll.u32 %s149, 4
        %s158 = int_to_ptr.vmem [resolvable:$true] %s157
        %160 = dma.hbm_to_vmem [thread:$0]  %s148, 16, %s158, [#allocation3]
        %s161 = sadd.s32 %s128, 2
        %s162 = sld [smem:[#allocation5 + %s161]]
        %s163 = smul.addr %s162, 16
        %s164 = scalar_lea.hbm %s1, %s163
        %s165 = scalar_lea.vmem [#allocation2], 2
        // Predicated region
        $region37: #{tpu_custom_call.1} parent=27 // pred_check
          _
        $region38: #{tpu_custom_call.1} parent=27 // pred_check_branch
          %167 = sbr.rel target = $region40
        $region39: #{tpu_custom_call.1} parent=27 // pred_region
          %168 = sst [smem:[#allocation10]] [#allocation15]
          %169 = sst [smem:[#allocation11]] [#allocation14]
        $region40: #{tpu_custom_call.1} parent=27 // pred_fallthru
          _
        %171 = shalt.err (0)
        %s173 = sshll.u32 %s165, 4
        %s174 = int_to_ptr.vmem [resolvable:$true] %s173
        %176 = dma.hbm_to_vmem [thread:$0]  %s164, 16, %s174, [#allocation3]
        %s177 = sadd.s32 %s128, 3
        %s178 = sld [smem:[#allocation5 + %s177]]
        %s179 = smul.addr %s178, 16
        %s180 = scalar_lea.hbm %s1, %s179
        %s181 = scalar_lea.vmem [#allocation2], 3
        // Predicated region
        $region41: #{tpu_custom_call.1} parent=27 // pred_check
          _
        $region42: #{tpu_custom_call.1} parent=27 // pred_check_branch
          %183 = sbr.rel target = $region44
        $region43: #{tpu_custom_call.1} parent=27 // pred_region
          %184 = sst [smem:[#allocation10]] [#allocation17]
          %185 = sst [smem:[#allocation11]] [#allocation16]
        $region44: #{tpu_custom_call.1} parent=27 // pred_fallthru
          _
        %187 = shalt.err (0)
        %s189 = sshll.u32 %s181, 4
        %s190 = int_to_ptr.vmem [resolvable:$true] %s189
        %192 = dma.hbm_to_vmem [thread:$0]  %s180, 16, %s190, [#allocation3]
        %s193 = sadd.s32 %s128, 4
        %s194 = sld [smem:[#allocation5 + %s193]]
        %s195 = smul.addr %s194, 16
        %s196 = scalar_lea.hbm %s1, %s195
        %s197 = scalar_lea.vmem [#allocation2], 4
        // Predicated region
        $region45: #{tpu_custom_call.1} parent=27 // pred_check
          _
        $region46: #{tpu_custom_call.1} parent=27 // pred_check_branch
          %199 = sbr.rel target = $region48
        $region47: #{tpu_custom_call.1} parent=27 // pred_region
          %200 = sst [smem:[#allocation10]] [#allocation19]
          %201 = sst [smem:[#allocation11]] [#allocation18]
        $region48: #{tpu_custom_call.1} parent=27 // pred_fallthru
          _
        %203 = shalt.err (0)
        %s205 = sshll.u32 %s197, 4
        %s206 = int_to_ptr.vmem [resolvable:$true] %s205
        %208 = dma.hbm_to_vmem [thread:$0]  %s196, 16, %s206, [#allocation3]
        %s209 = sadd.s32 %s128, 5
        %s210 = sld [smem:[#allocation5 + %s209]]
        %s211 = smul.addr %s210, 16
        %s212 = scalar_lea.hbm %s1, %s211
        %s213 = scalar_lea.vmem [#allocation2], 5
        // Predicated region
        $region49: #{tpu_custom_call.1} parent=27 // pred_check
          _
        $region50: #{tpu_custom_call.1} parent=27 // pred_check_branch
          %215 = sbr.rel target = $region52
        $region51: #{tpu_custom_call.1} parent=27 // pred_region
          %216 = sst [smem:[#allocation10]] [#allocation21]
          %217 = sst [smem:[#allocation11]] [#allocation20]
        $region52: #{tpu_custom_call.1} parent=27 // pred_fallthru
          _
        %219 = shalt.err (0)
        %s221 = sshll.u32 %s213, 4
        %s222 = int_to_ptr.vmem [resolvable:$true] %s221
        %224 = dma.hbm_to_vmem [thread:$0]  %s212, 16, %s222, [#allocation3]
        %s225 = sadd.s32 %s128, 6
        %s226 = sld [smem:[#allocation5 + %s225]]
        %s227 = smul.addr %s226, 16
        %s228 = scalar_lea.hbm %s1, %s227
        %s229 = scalar_lea.vmem [#allocation2], 6
        // Predicated region
        $region53: #{tpu_custom_call.1} parent=27 // pred_check
          _
        $region54: #{tpu_custom_call.1} parent=27 // pred_check_branch
          %231 = sbr.rel target = $region56
        $region55: #{tpu_custom_call.1} parent=27 // pred_region
          %232 = sst [smem:[#allocation10]] [#allocation23]
          %233 = sst [smem:[#allocation11]] [#allocation22]
        $region56: #{tpu_custom_call.1} parent=27 // pred_fallthru
          _
        %235 = shalt.err (0)
        %s237 = sshll.u32 %s229, 4
        %s238 = int_to_ptr.vmem [resolvable:$true] %s237
        %240 = dma.hbm_to_vmem [thread:$0]  %s228, 16, %s238, [#allocation3]
        %s241 = sadd.s32 %s128, 7
        %s242 = sld [smem:[#allocation5 + %s241]]
        %s243 = smul.addr %s242, 16
        %s244 = scalar_lea.hbm %s1, %s243
        %s245 = scalar_lea.vmem [#allocation2], 7
        // Predicated region
        $region57: #{tpu_custom_call.1} parent=27 // pred_check
          _
        $region58: #{tpu_custom_call.1} parent=27 // pred_check_branch
          %247 = sbr.rel target = $region60
        $region59: #{tpu_custom_call.1} parent=27 // pred_region
          %248 = sst [smem:[#allocation10]] [#allocation25]
          %249 = sst [smem:[#allocation11]] [#allocation24]
        $region60: #{tpu_custom_call.1} parent=27 // pred_fallthru
          _
        %251 = shalt.err (0)
        %s253 = sshll.u32 %s245, 4
        %s254 = int_to_ptr.vmem [resolvable:$true] %s253
        %256 = dma.hbm_to_vmem [thread:$0]  %s244, 16, %s254, [#allocation3]
        %s257 = smul.u32 8, 1
        %s258 = sshll.u32 %s257, 4
        %259 = dma.done [#allocation3], %s258
        %v260 = vld [vmem:[#allocation2] sm:$0xff]
        %261 = vadd.xlane.f32.xlu0 %v260
        %v262 = vpop.xlane.xlu0 %261
        %v263 = vrcp.pop 128.0
        %v264 = vmul.f32 %v262, %v263
        %v265 = vsub.f32 %v260, %v264
        %v266 = vmul.f32 %v265, %v265
        %267 = vadd.xlane.f32.xlu0 %v266
        %v268 = vpop.xlane.xlu0 %267
        %v269 = vmul.f32 %v268, %v263
        %v270 = vadd.f32 %v269, 1e-12
        %v271 = vrsqrt.pop %v270
        %v272 = vmul.f32 %v265, %v271
        %v274 = vlaneseq
        %v275 = vshrl.u32 %v274, 7
        %v276 = vsub.s32 0, %v275
        %v277 = vrot.slane %v129, %v276
        %v279 = vmul.f32 %v272, %v277
        %v281 = vlaneseq
        %v282 = vshrl.u32 %v281, 7
        %v283 = vsub.s32 0, %v282
        %v284 = vrot.slane %v130, %v283
        %v286 = vadd.f32 %v279, %v284
        %287 = vst [vmem:[%s127] sm:$0xff] %v286
        %s288 = sand.u32 %s72, 1
        %s289 = scalar_lea.sflag [#allocation7], %s288
        %s290 = sand.u32 %s72, 1
        %s291 = smul.addr %s290, 8
        %s292 = scalar_lea.vmem [#allocation6], %s291
        // Predicated region
        $region61: #{tpu_custom_call.1} parent=27 // pred_check
          %p293 = pneg %p82
        $region62: #{tpu_custom_call.1} parent=27 // pred_check_branch
          %295 = sbr.rel (%p293) target = $region64
        $region63: #{tpu_custom_call.1} parent=27 // pred_region
          %s297 = ssub.s32 128, 128
          %298 = vsyncadd %s289, %s297
          %s299 = smul.addr %s22, 128
          %s300 = scalar_lea.hbm %s4, %s299
          %s302 = sshll.u32 %s292, 4
          %s303 = int_to_ptr.vmem [resolvable:$true] %s302
          %305 = dma.vmem_to_hbm [thread:$0]  %s303, 128, %s300, %s289
        $region64: #{tpu_custom_call.1} parent=27 // pred_fallthru
          _
      $region28: #{tpu_custom_call.1} parent=5 // pred_fallthru
        _
      %p306 = scmp.le.s32.totalorder 2, %s17
      // Predicated region
      $region65: #{tpu_custom_call.1} parent=5 // pred_check
        %p307 = pneg %p306
      $region66: #{tpu_custom_call.1} parent=5 // pred_check_branch
        %309 = sbr.rel (%p307) target = $region68
      $region67: #{tpu_custom_call.1} parent=5 // pred_region
        %s310 = ssub.s32 %s17, 2
        // Predicated region
        $region69: #{tpu_custom_call.1} parent=67 // pred_check
          %p311 = pneg %p88
        $region70: #{tpu_custom_call.1} parent=67 // pred_check_branch
          %313 = sbr.rel (%p311) target = $region72
        $region71: #{tpu_custom_call.1} parent=67 // pred_region
          %s314 = sand.u32 %s73, 1
          %s315 = scalar_lea.sflag [#allocation7], %s314
          %s316 = sand.u32 %s73, 1
          %s317 = smul.addr %s316, 8
          %s318 = scalar_lea.vmem [#allocation6], %s317
          %319 = dma.done %s315, 128
        $region72: #{tpu_custom_call.1} parent=67 // pred_fallthru
          _
      $region68: #{tpu_custom_call.1} parent=5 // pred_fallthru
        _
    $region6: #{tpu_custom_call.1} parent=1 // loop_footer
      %s21 = sadd.s32 1, %s17
    $region7: #{tpu_custom_call.1} parent=1 // loop_footer_branch
      %16 = sbr.rel target = $region3
    $region8: #{tpu_custom_call.1} parent=1 // loop_exit
      _
    %320 = vsyncpa [#allocation7], 1
    %s321 = scalar_lea.sflag [#allocation7], 1
    %322 = vsyncpa %s321, 1
  %323 = vsyncmov [#allocation3]
  %s324 = vpop.sfrf %323
  %p325 = scmp.eq.s32.totalorder %s324, 0
  %p326 = pneg %p325
  %328 = shalt.err (%p326)
  %s329 = scalar_lea.sflag [#allocation3], 1
  %330 = vsyncmov %s329
  %s331 = vpop.sfrf %330
  %p332 = scmp.eq.s32.totalorder %s331, 0
  %p333 = pneg %p332
  %335 = shalt.err (%p333)

</llo_original>
